<compile_context>
chip_gen: v5e
topology: v5e:2x2
jax: 0.10.0
libtpu: 0.0.40
codegen_flags: <defaults>
</compile_context>

<pallas_src>
import jax
import jax.numpy as jnp
from jax.experimental import pallas as pl
from jax.experimental.pallas import tpu as pltpu

LOG_STD_MIN = -20.0
LOG_STD_MAX = 0.0


def actor_kernel(se_ref, w1t_ref, b1t_ref, wh_ref, bh_ref, out_ref):
    # se_ref : (in_dim + out_dim, tile_b)   rows = [state^T ; eps^T]
    # w1t_ref: (hidden, in_dim)             b1t_ref: (hidden, 1)
    # wh_ref : (hidden, 2*out_dim)          bh_ref : (1, 2*out_dim)
    # out_ref: (3*out_dim, tile_b)          rows = [action ; mu ; std]
    in_dim = w1t_ref.shape[1]
    out_dim = wh_ref.shape[1] // 2

    se = se_ref[...]                       # (in_dim+out_dim, tb)
    w1t = w1t_ref[...]                     # (hidden, in_dim)

    # ---- layer1 + ReLU on the VPU (K = in_dim is tiny; skip the MXU) ----
    # x^T = relu(W1^T s^T + b1^T), batch on the lane axis.
    x = b1t_ref[...]                       # (hidden, 1) -> broadcasts over lanes
    for k in range(in_dim):                # static unroll (in_dim known at trace)
        x = x + w1t[:, k:k + 1] * se[k:k + 1, :]
    x = jnp.maximum(x, 0.0)                # (hidden, tb)

    wh = wh_ref[...]                       # (hidden, 2*out_dim)
    bh = bh_ref[...]                       # (1, 2*out_dim)

    for r in range(out_dim):               # static unroll (out_dim = 1 here)
        # head matvecs: elementwise mul (VPU) + cross-sublane reduce (XLU)
        h_mu = jnp.sum(x * wh[:, r:r + 1], axis=0, keepdims=True) \
            + bh[0:1, r:r + 1]                                     # (1, tb)
        h_ls = jnp.sum(x * wh[:, out_dim + r:out_dim + r + 1],
                       axis=0, keepdims=True) \
            + bh[0:1, out_dim + r:out_dim + r + 1]                 # (1, tb)

        mu = jnp.tanh(h_mu) * 2.0
        log_std = LOG_STD_MIN + (jnp.tanh(h_ls) + 1.0) * (
            (LOG_STD_MAX - LOG_STD_MIN) * 0.5)
        std = jnp.exp(log_std)

        # Normal(mu, std).sample()  (reparameterized with pre-drawn eps row)
        action = mu + std * se[in_dim + r:in_dim + r + 1, :]

        # direct lane-dense stores into disjoint static rows (no concat)
        out_ref[r:r + 1, :] = action
        out_ref[out_dim + r:out_dim + r + 1, :] = mu
        out_ref[2 * out_dim + r:2 * out_dim + r + 1, :] = std


def fuse_head_params(params):
    """Transpose layer1 and concatenate the two head layers once (not per call)."""
    w1, b1, wmu, bmu, wls, bls = params
    w1t = w1.T                                  # (hidden, in_dim)
    b1t = b1.T                                  # (hidden, 1)
    wh = jnp.concatenate([wmu, wls], axis=1)    # (hidden, 2*out_dim)
    bh = jnp.concatenate([bmu, bls], axis=1)    # (1, 2*out_dim)
    return (w1t, b1t, wh, bh)


def actor_forward(state, fused_params, eps, *, block_b=512):
    """state: (B, in_dim) f32, eps: (B, out_dim) f32.

    Returns (action, mu, std), each (B, out_dim) f32.
    """
    w1t, b1t, wh, bh = fused_params
    B, in_dim = state.shape
    out_dim = eps.shape[1]

    # Fixed, 128-aligned batch tile; pad the batch (lane axis) up to a multiple
    # of the tile so every store is unmasked and every grid step is identical.
    block_b = pl.cdiv(block_b, 128) * 128
    tile_b = min(block_b, pl.cdiv(B, 128) * 128)
    b_pad = pl.cdiv(B, tile_b) * tile_b
    grid = (b_pad // tile_b,)

    # Pack [state^T ; eps^T] into one lane-major input -> one input DMA/step.
    se = jnp.concatenate([state.T, eps.T], axis=0)     # (in_dim+out_dim, B)
    if b_pad != B:
        se = jnp.pad(se, ((0, 0), (0, b_pad - B)))

    packed = pl.pallas_call(
        actor_kernel,
        out_shape=jax.ShapeDtypeStruct((3 * out_dim, b_pad), jnp.float32),
        grid=grid,
        in_specs=[
            pl.BlockSpec((in_dim + out_dim, tile_b), lambda i: (0, i)),
            # weights: constant block index -> loaded once, stay VMEM-resident
            pl.BlockSpec(w1t.shape, lambda i: (0, 0)),
            pl.BlockSpec(b1t.shape, lambda i: (0, 0)),
            pl.BlockSpec(wh.shape, lambda i: (0, 0)),
            pl.BlockSpec(bh.shape, lambda i: (0, 0)),
        ],
        out_specs=pl.BlockSpec((3 * out_dim, tile_b), lambda i: (0, i)),
        compiler_params=pltpu.CompilerParams(
            dimension_semantics=("parallel",),
            vmem_limit_bytes=32 * 1024 * 1024),
    )(se, w1t, b1t, wh, bh)

    packed = packed[:, :B]                              # drop tail padding
    action = packed[0:out_dim, :].T
    mu = packed[out_dim:2 * out_dim, :].T
    std = packed[2 * out_dim:3 * out_dim, :].T
    return action, mu, std


def init_params(key, in_dim, out_dim, hidden_dim=64, init_w=0.003):
    k1, k2, k3, k4, k5, k6 = jax.random.split(key, 6)
    # layer1: PyTorch default Linear init ~ U(-1/sqrt(in_dim), 1/sqrt(in_dim))
    bound = 1.0 / jnp.sqrt(jnp.float32(in_dim))
    w1 = jax.random.uniform(k1, (in_dim, hidden_dim), jnp.float32, -bound, bound)
    b1 = jax.random.uniform(k2, (1, hidden_dim), jnp.float32, -bound, bound)
    # mu / log_std heads: init_layer_uniform -> U(-0.003, 0.003)
    wmu = jax.random.uniform(k3, (hidden_dim, out_dim), jnp.float32, -init_w, init_w)
    bmu = jax.random.uniform(k4, (1, out_dim), jnp.float32, -init_w, init_w)
    wls = jax.random.uniform(k5, (hidden_dim, out_dim), jnp.float32, -init_w, init_w)
    bls = jax.random.uniform(k6, (1, out_dim), jnp.float32, -init_w, init_w)
    return (w1, b1, wmu, bmu, wls, bls)


def reference_forward(state, params, eps):
    w1, b1, wmu, bmu, wls, bls = params
    x = jnp.maximum(state @ w1 + b1, 0.0)
    mu = jnp.tanh(x @ wmu + bmu) * 2.0
    log_std = jnp.tanh(x @ wls + bls)
    log_std = LOG_STD_MIN + (log_std + 1.0) * (LOG_STD_MAX - LOG_STD_MIN) / 2.0
    std = jnp.exp(log_std)
    return mu + std * eps, mu, std


if __name__ == "__main__":
    # Pendulum-like dims: in_dim=3 (obs), out_dim=1 (torque), hidden=64.
    B, IN_DIM, OUT_DIM, HIDDEN = 8, 3, 1, 64

    key = jax.random.PRNGKey(0)
    k_state, k_params, k_eps = jax.random.split(key, 3)

    state = jax.random.normal(k_state, (B, IN_DIM), jnp.float32)
    params = init_params(k_params, IN_DIM, OUT_DIM, HIDDEN)
    eps = jax.random.normal(k_eps, (B, OUT_DIM), jnp.float32)

    fused = fuse_head_params(params)   # done once, outside the hot path
    action, mu, std = actor_forward(state, fused, eps)
    jax.block_until_ready((action, mu, std))

    # correctness check vs pure-JAX reference
    ref_action, ref_mu, ref_std = reference_forward(state, params, eps)
    assert jnp.allclose(action, ref_action, atol=1e-5, rtol=1e-5)
    assert jnp.allclose(mu, ref_mu, atol=1e-5, rtol=1e-5)
    assert jnp.allclose(std, ref_std, atol=1e-5, rtol=1e-5)

    print("KERNEL_OK")
</pallas_src>

<mosaic_0001>
module attributes {stable_mosaic.version = 11 : i64} {
  func.func @actor_kernel(%arg0: i32, %arg1: memref<4x128xf32, #tpu.memory_space<vmem>>, %arg2: memref<64x3xf32, #tpu.memory_space<vmem>>, %arg3: memref<64x1xf32, #tpu.memory_space<vmem>>, %arg4: memref<64x2xf32, #tpu.memory_space<vmem>>, %arg5: memref<1x2xf32, #tpu.memory_space<vmem>>, %arg6: memref<3x128xf32, #tpu.memory_space<vmem>>) attributes {dimension_semantics = [#tpu.dimension_semantics<parallel>], iteration_bounds = array<i64: 1>, scalar_prefetch = 0 : i64, scratch_operands = 0 : i64, tpu.core_type = #tpu.core_type<tc>, window_params = [{transform_indices = @transform_0, window_bounds = array<i64: 4, 128>}, {pipeline_mode = #tpu.pipeline_mode<synchronous>, transform_indices = @transform_1, window_bounds = array<i64: 64, 3>}, {pipeline_mode = #tpu.pipeline_mode<synchronous>, transform_indices = @transform_2, window_bounds = array<i64: 64, 1>}, {pipeline_mode = #tpu.pipeline_mode<synchronous>, transform_indices = @transform_3, window_bounds = array<i64: 64, 2>}, {pipeline_mode = #tpu.pipeline_mode<synchronous>, transform_indices = @transform_4, window_bounds = array<i64: 1, 2>}, {transform_indices = @transform_5, window_bounds = array<i64: 3, 128>}]} {
    %c0 = arith.constant 0 : index
    %c0_0 = arith.constant 0 : index
    %0 = vector.load %arg1[%c0, %c0_0] : memref<4x128xf32, #tpu.memory_space<vmem>>, vector<4x128xf32>
    %c0_1 = arith.constant 0 : index
    %c0_2 = arith.constant 0 : index
    %1 = vector.load %arg2[%c0_1, %c0_2] : memref<64x3xf32, #tpu.memory_space<vmem>>, vector<64x3xf32>
    %c0_3 = arith.constant 0 : index
    %c0_4 = arith.constant 0 : index
    %2 = vector.load %arg3[%c0_3, %c0_4] : memref<64x1xf32, #tpu.memory_space<vmem>>, vector<64x1xf32>
    %3 = vector.extract_strided_slice %1 {offsets = [0, 0], sizes = [64, 1], strides = [1, 1]} : vector<64x3xf32> to vector<64x1xf32>
    %4 = vector.extract_strided_slice %0 {offsets = [0, 0], sizes = [1, 128], strides = [1, 1]} : vector<4x128xf32> to vector<1x128xf32>
    %5 = vector.broadcast %3 : vector<64x1xf32> to vector<64x128xf32>
    %6 = vector.broadcast %4 : vector<1x128xf32> to vector<64x128xf32>
    %7 = arith.mulf %5, %6 : vector<64x128xf32>
    %8 = vector.broadcast %2 : vector<64x1xf32> to vector<64x128xf32>
    %9 = arith.addf %8, %7 : vector<64x128xf32>
    %10 = vector.extract_strided_slice %1 {offsets = [0, 1], sizes = [64, 1], strides = [1, 1]} : vector<64x3xf32> to vector<64x1xf32>
    %11 = vector.extract_strided_slice %0 {offsets = [1, 0], sizes = [1, 128], strides = [1, 1]} : vector<4x128xf32> to vector<1x128xf32>
    %12 = vector.broadcast %10 : vector<64x1xf32> to vector<64x128xf32>
    %13 = vector.broadcast %11 : vector<1x128xf32> to vector<64x128xf32>
    %14 = arith.mulf %12, %13 : vector<64x128xf32>
    %15 = arith.addf %9, %14 : vector<64x128xf32>
    %16 = vector.extract_strided_slice %1 {offsets = [0, 2], sizes = [64, 1], strides = [1, 1]} : vector<64x3xf32> to vector<64x1xf32>
    %17 = vector.extract_strided_slice %0 {offsets = [2, 0], sizes = [1, 128], strides = [1, 1]} : vector<4x128xf32> to vector<1x128xf32>
    %18 = vector.broadcast %16 : vector<64x1xf32> to vector<64x128xf32>
    %19 = vector.broadcast %17 : vector<1x128xf32> to vector<64x128xf32>
    %20 = arith.mulf %18, %19 : vector<64x128xf32>
    %21 = arith.addf %15, %20 : vector<64x128xf32>
    %cst = arith.constant 0.000000e+00 : f32
    %22 = vector.broadcast %cst : f32 to vector<64x128xf32>
    %23 = arith.maximumf %21, %22 : vector<64x128xf32>
    %c0_5 = arith.constant 0 : index
    %c0_6 = arith.constant 0 : index
    %24 = vector.load %arg4[%c0_5, %c0_6] : memref<64x2xf32, #tpu.memory_space<vmem>>, vector<64x2xf32>
    %c0_7 = arith.constant 0 : index
    %c0_8 = arith.constant 0 : index
    %25 = vector.load %arg5[%c0_7, %c0_8] : memref<1x2xf32, #tpu.memory_space<vmem>>, vector<1x2xf32>
    %26 = vector.extract_strided_slice %24 {offsets = [0, 0], sizes = [64, 1], strides = [1, 1]} : vector<64x2xf32> to vector<64x1xf32>
    %27 = vector.broadcast %26 : vector<64x1xf32> to vector<64x128xf32>
    %28 = arith.mulf %23, %27 : vector<64x128xf32>
    %cst_9 = arith.constant dense<0.000000e+00> : vector<128xf32>
    %29 = vector.multi_reduction <add>, %28, %cst_9 [0] : vector<64x128xf32> to vector<128xf32>
    %30 = vector.shape_cast %29 : vector<128xf32> to vector<1x128xf32>
    %31 = vector.extract_strided_slice %25 {offsets = [0, 0], sizes = [1, 1], strides = [1, 1]} : vector<1x2xf32> to vector<1x1xf32>
    %32 = vector.broadcast %31 : vector<1x1xf32> to vector<1x128xf32>
    %33 = arith.addf %30, %32 : vector<1x128xf32>
    %34 = vector.extract_strided_slice %24 {offsets = [0, 1], sizes = [64, 1], strides = [1, 1]} : vector<64x2xf32> to vector<64x1xf32>
    %35 = vector.broadcast %34 : vector<64x1xf32> to vector<64x128xf32>
    %36 = arith.mulf %23, %35 : vector<64x128xf32>
    %cst_10 = arith.constant dense<0.000000e+00> : vector<128xf32>
    %37 = vector.multi_reduction <add>, %36, %cst_10 [0] : vector<64x128xf32> to vector<128xf32>
    %38 = vector.shape_cast %37 : vector<128xf32> to vector<1x128xf32>
    %39 = vector.extract_strided_slice %25 {offsets = [0, 1], sizes = [1, 1], strides = [1, 1]} : vector<1x2xf32> to vector<1x1xf32>
    %40 = vector.broadcast %39 : vector<1x1xf32> to vector<1x128xf32>
    %41 = arith.addf %38, %40 : vector<1x128xf32>
    %42 = math.tanh %33 : vector<1x128xf32>
    %cst_11 = arith.constant 2.000000e+00 : f32
    %43 = vector.broadcast %cst_11 : f32 to vector<1x128xf32>
    %44 = arith.mulf %42, %43 : vector<1x128xf32>
    %45 = math.tanh %41 : vector<1x128xf32>
    %cst_12 = arith.constant 1.000000e+00 : f32
    %46 = vector.broadcast %cst_12 : f32 to vector<1x128xf32>
    %47 = arith.addf %45, %46 : vector<1x128xf32>
    %cst_13 = arith.constant 1.000000e+01 : f32
    %48 = vector.broadcast %cst_13 : f32 to vector<1x128xf32>
    %49 = arith.mulf %47, %48 : vector<1x128xf32>
    %cst_14 = arith.constant -2.000000e+01 : f32
    %50 = vector.broadcast %cst_14 : f32 to vector<1x128xf32>
    %51 = arith.addf %50, %49 : vector<1x128xf32>
    %52 = math.exp %51 : vector<1x128xf32>
    %53 = vector.extract_strided_slice %0 {offsets = [3, 0], sizes = [1, 128], strides = [1, 1]} : vector<4x128xf32> to vector<1x128xf32>
    %54 = arith.mulf %52, %53 : vector<1x128xf32>
    %55 = arith.addf %44, %54 : vector<1x128xf32>
    %c0_15 = arith.constant 0 : index
    %c0_16 = arith.constant 0 : index
    %56 = vector.load %arg6[%c0_15, %c0_16] : memref<3x128xf32, #tpu.memory_space<vmem>>, vector<1x128xf32>
    tpu.vector_store %arg6[%c0_15, %c0_16], %55 {strides = array<i32>} : memref<3x128xf32, #tpu.memory_space<vmem>>, vector<1x128xf32>,
    %c1 = arith.constant 1 : index
    %c0_17 = arith.constant 0 : index
    %57 = vector.load %arg6[%c1, %c0_17] : memref<3x128xf32, #tpu.memory_space<vmem>>, vector<1x128xf32>
    tpu.vector_store %arg6[%c1, %c0_17], %44 {strides = array<i32>} : memref<3x128xf32, #tpu.memory_space<vmem>>, vector<1x128xf32>,
    %c2 = arith.constant 2 : index
    %c0_18 = arith.constant 0 : index
    %58 = vector.load %arg6[%c2, %c0_18] : memref<3x128xf32, #tpu.memory_space<vmem>>, vector<1x128xf32>
    tpu.vector_store %arg6[%c2, %c0_18], %52 {strides = array<i32>} : memref<3x128xf32, #tpu.memory_space<vmem>>, vector<1x128xf32>,
    return
  }
  func.func @transform_0(%arg0: i32) -> (i32, i32) {
    %c0_i32 = arith.constant 0 : i32
    %c0_i32_0 = arith.constant 0 : i32
    return %c0_i32, %arg0 : i32, i32
  }
  func.func @transform_1(%arg0: i32) -> (i32, i32) {
    %c0_i32 = arith.constant 0 : i32
    %c0_i32_0 = arith.constant 0 : i32
    %c0_i32_1 = arith.constant 0 : i32
    return %c0_i32, %c0_i32_0 : i32, i32
  }
  func.func @transform_2(%arg0: i32) -> (i32, i32) {
    %c0_i32 = arith.constant 0 : i32
    %c0_i32_0 = arith.constant 0 : i32
    %c0_i32_1 = arith.constant 0 : i32
    return %c0_i32, %c0_i32_0 : i32, i32
  }
  func.func @transform_3(%arg0: i32) -> (i32, i32) {
    %c0_i32 = arith.constant 0 : i32
    %c0_i32_0 = arith.constant 0 : i32
    %c0_i32_1 = arith.constant 0 : i32
    return %c0_i32, %c0_i32_0 : i32, i32
  }
  func.func @transform_4(%arg0: i32) -> (i32, i32) {
    %c0_i32 = arith.constant 0 : i32
    %c0_i32_0 = arith.constant 0 : i32
    %c0_i32_1 = arith.constant 0 : i32
    return %c0_i32, %c0_i32_0 : i32, i32
  }
  func.func @transform_5(%arg0: i32) -> (i32, i32) {
    %c0_i32 = arith.constant 0 : i32
    %c0_i32_0 = arith.constant 0 : i32
    return %c0_i32, %arg0 : i32, i32
  }
}

</mosaic_0001>

<llo_original>
// kernel: tpu_custom_call.1
$region0: #{tpu_custom_call.1}
  #allocation0 [shape = 'u32[]', space=smem, size = 0x4, offset = 0x4, fixed_abs, tag = 'smem constant byte address 0x4 - core index']
  #allocation1 [shape = 'u32[72,128]{1,0:T(1,128)}', space=vmem, size = 0x9000, scoped, tag = 'internal scratch']
  %s0 = inlined_call_operand.vmem [shape: f32[4,128], index: 0, kind: input, shape index: {}]
  %s1 = inlined_call_operand.vmem [shape: f32[64,3], index: 1, kind: input, shape index: {}]
  %s2 = inlined_call_operand.vmem [shape: f32[64,1], index: 2, kind: input, shape index: {}]
  %s3 = inlined_call_operand.vmem [shape: f32[64,2], index: 3, kind: input, shape index: {}]
  %s4 = inlined_call_operand.vmem [shape: f32[1,2], index: 4, kind: input, shape index: {}]
  %s5 = inlined_call_operand.hbm [shape: f32[3,128], index: 5, kind: output, shape index: {}]
  %s6 = sld [smem:[#allocation0]]
  $region30: #{tpu_custom_call.1} parent=0
    _
  %s8 = ssub.s32 1, %s6
  %s9 = scalar_select 0, %s8, %s6
  $region1: #{tpu_custom_call.1} parent=0
    #allocation2 [shape = 'u8[2048]{0}', space=vmem, size = 0x800, scoped, tag = 'output window, operand 0, single buffered']
    #allocation3 [shape = 's32[1]{0}', space=sflag, size = 0x4, scoped, tag = 'scoped memory for tpu_custom_call.1']
    %10 = vsyncpa [#allocation3], 0
    // Predicated region
    $region2: #{tpu_custom_call.1} parent=1 // pred_check
      _
    $region3: #{tpu_custom_call.1} parent=1 // pred_check_branch
      %12 = sbr.rel (0) target = $region5
    $region4: #{tpu_custom_call.1} parent=1 // pred_region
      _
    $region5: #{tpu_custom_call.1} parent=1 // pred_fallthru
      _
    // Predicated region
    $region6: #{tpu_custom_call.1} parent=1 // pred_check
      _
    $region7: #{tpu_custom_call.1} parent=1 // pred_check_branch
      %14 = sbr.rel (0) target = $region9
    $region8: #{tpu_custom_call.1} parent=1 // pred_region
      _
    $region9: #{tpu_custom_call.1} parent=1 // pred_fallthru
      _
    // Predicated region
    $region10: #{tpu_custom_call.1} parent=1 // pred_check
      _
    $region11: #{tpu_custom_call.1} parent=1 // pred_check_branch
      %16 = sbr.rel (0) target = $region13
    $region12: #{tpu_custom_call.1} parent=1 // pred_region
      _
    $region13: #{tpu_custom_call.1} parent=1 // pred_fallthru
      _
    // Predicated region
    $region14: #{tpu_custom_call.1} parent=1 // pred_check
      _
    $region15: #{tpu_custom_call.1} parent=1 // pred_check_branch
      %18 = sbr.rel (0) target = $region17
    $region16: #{tpu_custom_call.1} parent=1 // pred_region
      _
    $region17: #{tpu_custom_call.1} parent=1 // pred_fallthru
      _
    // Predicated region
    $region18: #{tpu_custom_call.1} parent=1 // pred_check
      _
    $region19: #{tpu_custom_call.1} parent=1 // pred_check_branch
      %20 = sbr.rel (0) target = $region21
    $region20: #{tpu_custom_call.1} parent=1 // pred_region
      _
    $region21: #{tpu_custom_call.1} parent=1 // pred_fallthru
      _
    %v21 = vld [vmem:[%s0] sm:$0xf]
    %v22 = vld [vmem:[%s1] sm:$0xff]
    %v23 = vld [vmem:[%s1 + $0x8] sm:$0xff]
    %v24 = vld [vmem:[%s1 + $0x10] sm:$0xff]
    %v25 = vld [vmem:[%s1 + $0x18] sm:$0xff]
    %v26 = vld [vmem:[%s1 + $0x20] sm:$0xff]
    %v27 = vld [vmem:[%s1 + $0x28] sm:$0xff]
    %v28 = vld [vmem:[%s1 + $0x30] sm:$0xff]
    %v29 = vld [vmem:[%s1 + $0x38] sm:$0xff]
    %v30 = vld [vmem:[%s2] sm:$0xff]
    %v31 = vld [vmem:[%s2 + $0x8] sm:$0xff]
    %v32 = vld [vmem:[%s2 + $0x10] sm:$0xff]
    %v33 = vld [vmem:[%s2 + $0x18] sm:$0xff]
    %v34 = vld [vmem:[%s2 + $0x20] sm:$0xff]
    %v35 = vld [vmem:[%s2 + $0x28] sm:$0xff]
    %v36 = vld [vmem:[%s2 + $0x30] sm:$0xff]
    %v37 = vld [vmem:[%s2 + $0x38] sm:$0xff]
    %39 = vset.pattern.permute.xlu0 0
    %40 = vperm.xlu0 %39, %v22
    %v41 = vpop.permute.xlu0 %40
    %44 = vset.pattern.permute.xlu0 0
    %45 = vperm.xlu0 %44, %v23
    %v46 = vpop.permute.xlu0 %45
    %49 = vset.pattern.permute.xlu0 0
    %50 = vperm.xlu0 %49, %v24
    %v51 = vpop.permute.xlu0 %50
    %54 = vset.pattern.permute.xlu0 0
    %55 = vperm.xlu0 %54, %v25
    %v56 = vpop.permute.xlu0 %55
    %59 = vset.pattern.permute.xlu0 0
    %60 = vperm.xlu0 %59, %v26
    %v61 = vpop.permute.xlu0 %60
    %64 = vset.pattern.permute.xlu0 0
    %65 = vperm.xlu0 %64, %v27
    %v66 = vpop.permute.xlu0 %65
    %69 = vset.pattern.permute.xlu0 0
    %70 = vperm.xlu0 %69, %v28
    %v71 = vpop.permute.xlu0 %70
    %74 = vset.pattern.permute.xlu0 0
    %75 = vperm.xlu0 %74, %v29
    %v76 = vpop.permute.xlu0 %75
    %v78 = vperm.slane %v21, 0
    %v79 = vmul.f32 %v41, %v78
    %v80 = vmul.f32 %v46, %v78
    %v81 = vmul.f32 %v51, %v78
    %v82 = vmul.f32 %v56, %v78
    %v83 = vmul.f32 %v61, %v78
    %v84 = vmul.f32 %v66, %v78
    %v85 = vmul.f32 %v71, %v78
    %v86 = vmul.f32 %v76, %v78
    %88 = vset.pattern.permute.xlu0 0
    %89 = vperm.xlu0 %88, %v30
    %v90 = vpop.permute.xlu0 %89
    %93 = vset.pattern.permute.xlu0 0
    %94 = vperm.xlu0 %93, %v31
    %v95 = vpop.permute.xlu0 %94
    %98 = vset.pattern.permute.xlu0 0
    %99 = vperm.xlu0 %98, %v32
    %v100 = vpop.permute.xlu0 %99
    %103 = vset.pattern.permute.xlu0 0
    %104 = vperm.xlu0 %103, %v33
    %v105 = vpop.permute.xlu0 %104
    %108 = vset.pattern.permute.xlu0 0
    %109 = vperm.xlu0 %108, %v34
    %v110 = vpop.permute.xlu0 %109
    %113 = vset.pattern.permute.xlu0 0
    %114 = vperm.xlu0 %113, %v35
    %v115 = vpop.permute.xlu0 %114
    %118 = vset.pattern.permute.xlu0 0
    %119 = vperm.xlu0 %118, %v36
    %v120 = vpop.permute.xlu0 %119
    %123 = vset.pattern.permute.xlu0 0
    %124 = vperm.xlu0 %123, %v37
    %v125 = vpop.permute.xlu0 %124
    %v127 = vadd.f32 %v90, %v79
    %v128 = vadd.f32 %v95, %v80
    %v129 = vadd.f32 %v100, %v81
    %v130 = vadd.f32 %v105, %v82
    %v131 = vadd.f32 %v110, %v83
    %v132 = vadd.f32 %v115, %v84
    %v133 = vadd.f32 %v120, %v85
    %v134 = vadd.f32 %v125, %v86
    %135 = vset.pattern.permute.xlu0 1
    %136 = vperm.xlu0 %135, %v22
    %v137 = vpop.permute.xlu0 %136
    %139 = vset.pattern.permute.xlu0 1
    %140 = vperm.xlu0 %139, %v23
    %v141 = vpop.permute.xlu0 %140
    %143 = vset.pattern.permute.xlu0 1
    %144 = vperm.xlu0 %143, %v24
    %v145 = vpop.permute.xlu0 %144
    %147 = vset.pattern.permute.xlu0 1
    %148 = vperm.xlu0 %147, %v25
    %v149 = vpop.permute.xlu0 %148
    %151 = vset.pattern.permute.xlu0 1
    %152 = vperm.xlu0 %151, %v26
    %v153 = vpop.permute.xlu0 %152
    %155 = vset.pattern.permute.xlu0 1
    %156 = vperm.xlu0 %155, %v27
    %v157 = vpop.permute.xlu0 %156
    %159 = vset.pattern.permute.xlu0 1
    %160 = vperm.xlu0 %159, %v28
    %v161 = vpop.permute.xlu0 %160
    %163 = vset.pattern.permute.xlu0 1
    %164 = vperm.xlu0 %163, %v29
    %v165 = vpop.permute.xlu0 %164
    %v167 = vperm.slane %v21, 1
    %v168 = vmul.f32 %v137, %v167
    %v169 = vmul.f32 %v141, %v167
    %v170 = vmul.f32 %v145, %v167
    %v171 = vmul.f32 %v149, %v167
    %v172 = vmul.f32 %v153, %v167
    %v173 = vmul.f32 %v157, %v167
    %v174 = vmul.f32 %v161, %v167
    %v175 = vmul.f32 %v165, %v167
    %v176 = vadd.f32 %v127, %v168
    %v177 = vadd.f32 %v128, %v169
    %v178 = vadd.f32 %v129, %v170
    %v179 = vadd.f32 %v130, %v171
    %v180 = vadd.f32 %v131, %v172
    %v181 = vadd.f32 %v132, %v173
    %v182 = vadd.f32 %v133, %v174
    %v183 = vadd.f32 %v134, %v175
    %184 = vset.pattern.permute.xlu0 2
    %185 = vperm.xlu0 %184, %v22
    %v186 = vpop.permute.xlu0 %185
    %188 = vset.pattern.permute.xlu0 2
    %189 = vperm.xlu0 %188, %v23
    %v190 = vpop.permute.xlu0 %189
    %192 = vset.pattern.permute.xlu0 2
    %193 = vperm.xlu0 %192, %v24
    %v194 = vpop.permute.xlu0 %193
    %196 = vset.pattern.permute.xlu0 2
    %197 = vperm.xlu0 %196, %v25
    %v198 = vpop.permute.xlu0 %197
    %200 = vset.pattern.permute.xlu0 2
    %201 = vperm.xlu0 %200, %v26
    %v202 = vpop.permute.xlu0 %201
    %204 = vset.pattern.permute.xlu0 2
    %205 = vperm.xlu0 %204, %v27
    %v206 = vpop.permute.xlu0 %205
    %208 = vset.pattern.permute.xlu0 2
    %209 = vperm.xlu0 %208, %v28
    %v210 = vpop.permute.xlu0 %209
    %212 = vset.pattern.permute.xlu0 2
    %213 = vperm.xlu0 %212, %v29
    %v214 = vpop.permute.xlu0 %213
    %v216 = vperm.slane %v21, 2
    %v217 = vmul.f32 %v186, %v216
    %v218 = vmul.f32 %v190, %v216
    %v219 = vmul.f32 %v194, %v216
    %v220 = vmul.f32 %v198, %v216
    %v221 = vmul.f32 %v202, %v216
    %v222 = vmul.f32 %v206, %v216
    %v223 = vmul.f32 %v210, %v216
    %v224 = vmul.f32 %v214, %v216
    %v225 = vadd.f32 %v176, %v217
    %v226 = vadd.f32 %v177, %v218
    %v227 = vadd.f32 %v178, %v219
    %v228 = vadd.f32 %v179, %v220
    %v229 = vadd.f32 %v180, %v221
    %v230 = vadd.f32 %v181, %v222
    %v231 = vadd.f32 %v182, %v223
    %v232 = vadd.f32 %v183, %v224
    %v233 = vmax.f32 %v225, 0.0
    %v234 = vmax.f32 %v226, 0.0
    %v235 = vmax.f32 %v227, 0.0
    %v236 = vmax.f32 %v228, 0.0
    %v237 = vmax.f32 %v229, 0.0
    %v238 = vmax.f32 %v230, 0.0
    %v239 = vmax.f32 %v231, 0.0
    %v240 = vmax.f32 %v232, 0.0
    %v241 = vld [vmem:[%s3] sm:$0xff]
    %v242 = vld [vmem:[%s3 + $0x8] sm:$0xff]
    %v243 = vld [vmem:[%s3 + $0x10] sm:$0xff]
    %v244 = vld [vmem:[%s3 + $0x18] sm:$0xff]
    %v245 = vld [vmem:[%s3 + $0x20] sm:$0xff]
    %v246 = vld [vmem:[%s3 + $0x28] sm:$0xff]
    %v247 = vld [vmem:[%s3 + $0x30] sm:$0xff]
    %v248 = vld [vmem:[%s3 + $0x38] sm:$0xff]
    %v249 = vld [vmem:[%s4] sm:$0x1]
    %251 = vset.pattern.permute.xlu0 0
    %252 = vperm.xlu0 %251, %v241
    %v253 = vpop.permute.xlu0 %252
    %256 = vset.pattern.permute.xlu0 0
    %257 = vperm.xlu0 %256, %v242
    %v258 = vpop.permute.xlu0 %257
    %261 = vset.pattern.permute.xlu0 0
    %262 = vperm.xlu0 %261, %v243
    %v263 = vpop.permute.xlu0 %262
    %266 = vset.pattern.permute.xlu0 0
    %267 = vperm.xlu0 %266, %v244
    %v268 = vpop.permute.xlu0 %267
    %271 = vset.pattern.permute.xlu0 0
    %272 = vperm.xlu0 %271, %v245
    %v273 = vpop.permute.xlu0 %272
    %276 = vset.pattern.permute.xlu0 0
    %277 = vperm.xlu0 %276, %v246
    %v278 = vpop.permute.xlu0 %277
    %281 = vset.pattern.permute.xlu0 0
    %282 = vperm.xlu0 %281, %v247
    %v283 = vpop.permute.xlu0 %282
    %286 = vset.pattern.permute.xlu0 0
    %287 = vperm.xlu0 %286, %v248
    %v288 = vpop.permute.xlu0 %287
    %v290 = vmul.f32 %v233, %v253
    %v291 = vmul.f32 %v234, %v258
    %v292 = vmul.f32 %v235, %v263
    %v293 = vmul.f32 %v236, %v268
    %v294 = vmul.f32 %v237, %v273
    %v295 = vmul.f32 %v238, %v278
    %v296 = vmul.f32 %v239, %v283
    %v297 = vmul.f32 %v240, %v288
    %v298 = vadd.f32 %v290, %v291
    %v299 = vadd.f32 %v298, %v292
    %v300 = vadd.f32 %v299, %v293
    %v301 = vadd.f32 %v300, %v294
    %v302 = vadd.f32 %v301, %v295
    %v303 = vadd.f32 %v302, %v296
    %v304 = vadd.f32 %v303, %v297
    %v305 = vrot.slane %v304, 4
    %v306 = vadd.f32 %v304, %v305
    %v307 = vrot.slane %v306, 2
    %v308 = vadd.f32 %v306, %v307
    %v309 = vrot.slane %v308, 1
    %v310 = vadd.f32 %v308, %v309
    %312 = vset.pattern.permute.xlu0 0
    %313 = vperm.xlu0 %312, %v249
    %v314 = vpop.permute.xlu0 %313
    %v316 = vperm.slane %v314, 0
    %v317 = vadd.f32 %v310, %v316
    %318 = vset.pattern.permute.xlu0 1
    %319 = vperm.xlu0 %318, %v241
    %v320 = vpop.permute.xlu0 %319
    %322 = vset.pattern.permute.xlu0 1
    %323 = vperm.xlu0 %322, %v242
    %v324 = vpop.permute.xlu0 %323
    %326 = vset.pattern.permute.xlu0 1
    %327 = vperm.xlu0 %326, %v243
    %v328 = vpop.permute.xlu0 %327
    %330 = vset.pattern.permute.xlu0 1
    %331 = vperm.xlu0 %330, %v244
    %v332 = vpop.permute.xlu0 %331
    %334 = vset.pattern.permute.xlu0 1
    %335 = vperm.xlu0 %334, %v245
    %v336 = vpop.permute.xlu0 %335
    %338 = vset.pattern.permute.xlu0 1
    %339 = vperm.xlu0 %338, %v246
    %v340 = vpop.permute.xlu0 %339
    %342 = vset.pattern.permute.xlu0 1
    %343 = vperm.xlu0 %342, %v247
    %v344 = vpop.permute.xlu0 %343
    %346 = vset.pattern.permute.xlu0 1
    %347 = vperm.xlu0 %346, %v248
    %v348 = vpop.permute.xlu0 %347
    %v350 = vmul.f32 %v233, %v320
    %v351 = vmul.f32 %v234, %v324
    %v352 = vmul.f32 %v235, %v328
    %v353 = vmul.f32 %v236, %v332
    %v354 = vmul.f32 %v237, %v336
    %v355 = vmul.f32 %v238, %v340
    %v356 = vmul.f32 %v239, %v344
    %v357 = vmul.f32 %v240, %v348
    %v358 = vadd.f32 %v350, %v351
    %v359 = vadd.f32 %v358, %v352
    %v360 = vadd.f32 %v359, %v353
    %v361 = vadd.f32 %v360, %v354
    %v362 = vadd.f32 %v361, %v355
    %v363 = vadd.f32 %v362, %v356
    %v364 = vadd.f32 %v363, %v357
    %v365 = vrot.slane %v364, 4
    %v366 = vadd.f32 %v364, %v365
    %v367 = vrot.slane %v366, 2
    %v368 = vadd.f32 %v366, %v367
    %v369 = vrot.slane %v368, 1
    %v370 = vadd.f32 %v368, %v369
    %371 = vset.pattern.permute.xlu0 1
    %372 = vperm.xlu0 %371, %v249
    %v373 = vpop.permute.xlu0 %372
    %v375 = vperm.slane %v373, 0
    %v376 = vadd.f32 %v370, %v375
    %v377 = vtanh.pop %v317
    %v378 = vmul.f32 %v377, 2.0
    %v379 = vtanh.pop %v376
    %v380 = vadd.f32 %v379, 1.0
    %v381 = vmul.f32 %v380, 10.0
    %v382 = vadd.f32 %v381, -20.0
    %v383 = vmul.f32 %v382, 1.442695
    %v384 = vpow.pop %v383
    %v385 = vmul.f32 %v384, %v21
    %v386 = vadd.f32 %v378, %v385
    %387 = vst [vmem:[#allocation2 - $0x3] sm:$0x8] %v386
    %388 = vst [vmem:[#allocation2 + $0x1] sm:$0x1] %v378
    %389 = vst [vmem:[#allocation2 + $0x2] sm:$0x1] %v384
    // Predicated region
    $region22: #{tpu_custom_call.1} parent=1 // pred_check
      _
    $region23: #{tpu_custom_call.1} parent=1 // pred_check_branch
      %391 = sbr.rel (0) target = $region25
    $region24: #{tpu_custom_call.1} parent=1 // pred_region
      %393 = vsyncadd [#allocation3], 0
      %s395 = sshll.u32 [#allocation2], 4
      %s396 = int_to_ptr.vmem [resolvable:$true] %s395
      %s397 = sshll.u32 %s5, 4
      %s398 = int_to_ptr.hbm [resolvable:$true] %s397
      %400 = dma.vmem_to_hbm [thread:$0]  %s396, 64, %s398, [#allocation3]
    $region25: #{tpu_custom_call.1} parent=1 // pred_fallthru
      _
    // Predicated region
    $region26: #{tpu_custom_call.1} parent=1 // pred_check
      _
    $region27: #{tpu_custom_call.1} parent=1 // pred_check_branch
      %402 = sbr.rel (0) target = $region29
    $region28: #{tpu_custom_call.1} parent=1 // pred_region
      %404 = dma.done [#allocation3], 64
    $region29: #{tpu_custom_call.1} parent=1 // pred_fallthru
      _
    %405 = vsyncpa [#allocation3], 1

</llo_original>
